<compile_context>
chip_gen: v5e
topology: v5e:2x2
jax: 0.10.0
libtpu: 0.0.40
codegen_flags: <defaults>
</compile_context>

<pallas_src>
import functools

import jax
import jax.numpy as jnp
import numpy as np
from jax.experimental import pallas as pl
from jax.experimental.pallas import tpu as pltpu


def _identity_kernel(x_ref, o_ref):
    # DummyLayerNorm.forward(x) == x  -> straight copy of the tile.
    o_ref[...] = x_ref[...]


def _identity_copy_2d(x2: jax.Array) -> jax.Array:
    """Identity pass over a flattened (rows, cols) array via Pallas."""
    rows, cols = x2.shape
    itemsize = jnp.dtype(x2.dtype).itemsize

    # Largest row tile that keeps each buffer <= ~2 MiB: safe for the smallest
    # scoped-VMEM default (v5e) with double-buffered input + output tiles.
    budget_bytes = 2 * 1024 * 1024
    rows_per_tile = (budget_bytes // max(1, cols * itemsize)) // 8 * 8
    rows_per_tile = int(min(rows, max(8, rows_per_tile)))

    grid = (pl.cdiv(rows, rows_per_tile),)

    return pl.pallas_call(
        _identity_kernel,
        out_shape=jax.ShapeDtypeStruct((rows, cols), x2.dtype),
        grid=grid,
        in_specs=[pl.BlockSpec((rows_per_tile, cols), lambda i: (i, 0))],
        out_specs=pl.BlockSpec((rows_per_tile, cols), lambda i: (i, 0)),
        # Reuse the input HBM buffer as the output buffer: no second
        # allocation, and the write lands back in place.
        input_output_aliases={0: 0},
        compiler_params=pltpu.CompilerParams(
            dimension_semantics=("parallel",),
        ),
        cost_estimate=pl.CostEstimate(
            flops=0,
            transcendentals=0,
            bytes_accessed=2 * rows * cols * itemsize,
        ),
    )(x2)


@functools.partial(jax.jit, donate_argnums=0)
def dummy_layer_norm(x: jax.Array) -> jax.Array:
    """Pallas implementation of DummyLayerNorm.forward (identity).

    Note: the truly optimal implementation is `return x`; the Pallas copy is
    kept so the data path runs through an explicit kernel.
    """
    orig_shape = x.shape
    cols = orig_shape[-1]
    # Collapse (B, S, D) -> (B*S, D): rows become a multiple of 8 here
    # (2*4 = 8), so blocks are exact (8, 128) vreg tiles.
    x2 = x.reshape(-1, cols)
    y2 = _identity_copy_2d(x2)
    return y2.reshape(orig_shape)


if __name__ == "__main__":
    # DummyLayerNorm takes a cfg but defines no parameters, so there is
    # nothing to initialize.  Shape matches the module's example tensor
    # torch.rand(2, 4, 768).
    key = jax.random.PRNGKey(0)
    x = jax.random.uniform(key, (2, 4, 768), dtype=jnp.float32)

    # Capture a host copy BEFORE calling: x is donated (aliased) to the output.
    expected = np.asarray(x)

    y = dummy_layer_norm(x)
    y = jax.block_until_ready(y)

    assert y.shape == expected.shape and y.dtype == expected.dtype
    assert np.array_equal(np.asarray(y), expected)
    print("KERNEL_OK")
</pallas_src>

<mosaic_0001>
module attributes {stable_mosaic.version = 11 : i64} {
  func.func @_identity_kernel(%arg0: i32, %arg1: memref<8x768xf32, #tpu.memory_space<vmem>>, %arg2: memref<8x768xf32, #tpu.memory_space<vmem>>) attributes {dimension_semantics = [#tpu.dimension_semantics<parallel>], iteration_bounds = array<i64: 1>, scalar_prefetch = 0 : i64, scratch_operands = 0 : i64, tpu.core_type = #tpu.core_type<tc>, window_params = [{transform_indices = @transform_0, window_bounds = array<i64: 8, 768>}, {transform_indices = @transform_1, window_bounds = array<i64: 8, 768>}]} {
    %c0 = arith.constant 0 : index
    %c0_0 = arith.constant 0 : index
    %0 = vector.load %arg1[%c0, %c0_0] : memref<8x768xf32, #tpu.memory_space<vmem>>, vector<8x768xf32>
    %c0_1 = arith.constant 0 : index
    %c0_2 = arith.constant 0 : index
    %1 = vector.load %arg2[%c0_1, %c0_2] : memref<8x768xf32, #tpu.memory_space<vmem>>, vector<8x768xf32>
    tpu.vector_store %arg2[%c0_1, %c0_2], %0 {strides = array<i32>} : memref<8x768xf32, #tpu.memory_space<vmem>>, vector<8x768xf32>,
    return
  }
  func.func @transform_0(%arg0: i32) -> (i32, i32) {
    %c0_i32 = arith.constant 0 : i32
    %c0_i32_0 = arith.constant 0 : i32
    return %arg0, %c0_i32 : i32, i32
  }
  func.func @transform_1(%arg0: i32) -> (i32, i32) {
    %c0_i32 = arith.constant 0 : i32
    %c0_i32_0 = arith.constant 0 : i32
    return %arg0, %c0_i32 : i32, i32
  }
}

</mosaic_0001>

<llo_original>
// kernel: dummy_layer_norm.1
$region0: #{dummy_layer_norm.1}
  #allocation0 [shape = 'u32[]', space=smem, size = 0x4, offset = 0x4, fixed_abs, tag = 'smem constant byte address 0x4 - core index']
  #allocation1 [shape = 'u32[72,128]{1,0:T(1,128)}', space=vmem, size = 0x9000, scoped, tag = 'internal scratch']
  %s0 = inlined_call_operand.vmem [shape: f32[8,768], index: 0, kind: input, shape index: {}, may-alias: {0,1}]
  %s1 = inlined_call_operand.vmem [shape: f32[8,768], index: 1, kind: output, shape index: {}, may-alias: {0,1}]
  %s2 = sld [smem:[#allocation0]]
  $region14: #{dummy_layer_norm.1} parent=0
    _
  %s4 = ssub.s32 1, %s2
  %s5 = scalar_select 0, %s4, %s2
  // Predicated region
  $region2: #{dummy_layer_norm.1} parent=0 // pred_check
    _
  $region3: #{dummy_layer_norm.1} parent=0 // pred_check_branch
    %7 = sbr.rel (0) target = $region5
  $region4: #{dummy_layer_norm.1} parent=0 // pred_region
    _
  $region5: #{dummy_layer_norm.1} parent=0 // pred_fallthru
    _
  %v8 = vld [vmem:[%s0] sm:$0xff]
  %v9 = vld [vmem:[%s0 + $0x8] sm:$0xff]
  %v10 = vld [vmem:[%s0 + $0x10] sm:$0xff]
  %v11 = vld [vmem:[%s0 + $0x18] sm:$0xff]
  %v12 = vld [vmem:[%s0 + $0x20] sm:$0xff]
  %v13 = vld [vmem:[%s0 + $0x28] sm:$0xff]
  %14 = vst [vmem:[%s1] sm:$0xff] %v8
  %15 = vst [vmem:[%s1 + $0x8] sm:$0xff] %v9
  %16 = vst [vmem:[%s1 + $0x10] sm:$0xff] %v10
  %17 = vst [vmem:[%s1 + $0x18] sm:$0xff] %v11
  %18 = vst [vmem:[%s1 + $0x20] sm:$0xff] %v12
  %19 = vst [vmem:[%s1 + $0x28] sm:$0xff] %v13
  // Predicated region
  $region6: #{dummy_layer_norm.1} parent=0 // pred_check
    _
  $region7: #{dummy_layer_norm.1} parent=0 // pred_check_branch
    %21 = sbr.rel (0) target = $region9
  $region8: #{dummy_layer_norm.1} parent=0 // pred_region
    _
  $region9: #{dummy_layer_norm.1} parent=0 // pred_fallthru
    _
  // Predicated region
  $region10: #{dummy_layer_norm.1} parent=0 // pred_check
    _
  $region11: #{dummy_layer_norm.1} parent=0 // pred_check_branch
    %23 = sbr.rel (0) target = $region13
  $region12: #{dummy_layer_norm.1} parent=0 // pred_region
    _
  $region13: #{dummy_layer_norm.1} parent=0 // pred_fallthru
    _

</llo_original>
